<compile_context>
chip_gen: v6e
topology: v6e:2x2x1
jax: 0.10.0
libtpu: 0.0.40
codegen_flags: <defaults>
</compile_context>

<pallas_src>
import jax
import jax.numpy as jnp
from jax import lax
from jax.experimental import pallas as pl
from jax.experimental.pallas import tpu as pltpu


def _round_up(x, m):
    return (x + m - 1) // m * m


def _out_cols(num_out):
    """Lane-dense (multiple-of-128) output width only if the pad is cheap."""
    npad = _round_up(num_out, 128)
    # Padding multiplies output HBM bytes by npad/num_out; only accept <= 1.25x.
    return npad if npad * 4 <= num_out * 5 else num_out


def _vmem_budget_bytes():
    """Generation-aware VMEM budget with headroom for compiler scratch."""
    try:
        cap = int(pltpu.get_tpu_info().vmem_capacity_bytes)
    except Exception:
        cap = 64 * 1024 * 1024  # assume the smallest (v7x per-TensorCore)
    # v7x (64 MiB)  -> ~52 MiB budget; v5e/v6e (128 MiB) -> ~108 MiB budget.
    return min(int(cap * 0.85), cap - 12 * 1024 * 1024)


def _vmem_bytes(tb, tn, num_in, n_steps, out_bytes):
    # Streamed tiles (double-buffered by the Pallas pipeline).
    stream = 2 * (tb * num_in * 4          # x  f32
                  + tb * 4                 # y  int32
                  + tb * tn * out_bytes)   # out
    # Params: the pipeline still allocates two buffers per operand even when
    # the revisit logic skips the re-DMA, so count them twice to stay safe.
    params = 2 * (num_in * tn * 2          # W  bf16
                  + tn * 4                 # b  f32
                  + n_steps * tn * 2)      # E  bf16
    # Large in-kernel intermediates (z, gamma f32; onehot bf16).
    interm = 2 * tb * tn * 4 + tb * n_steps * 2
    return stream + params + interm


def cond_linear_kernel(x_ref, y_ref, w_ref, b_ref, e_ref, o_ref):
    # x: (TB, num_in)    f32   streamed over batch
    # y: (TB, 1)         int32 streamed over batch
    # w: (num_in, TN)    bf16  N-tiled, resident across the batch axis
    # b: (1, TN)         f32   N-tiled, resident
    # e: (n_steps, TN)   bf16  N-tiled, resident (embedding table)
    # o: (TB, TN)        out_dtype
    n_steps = e_ref.shape[0]

    # Cast x per-tile on the VPU; MXU runs bf16 x bf16 with f32 accumulate.
    x_bf = x_ref[...].astype(jnp.bfloat16)
    z = jnp.dot(x_bf, w_ref[...], preferred_element_type=jnp.float32)
    z = z + b_ref[...]                                   # f32 bias broadcast

    # Fused embedding gather: exact 0/1 one-hot (bf16) matmul against the
    # resident bf16 table; gamma never round-trips through HBM.
    ids = y_ref[...]                                           # (TB, 1) int32
    steps = lax.broadcasted_iota(jnp.int32, (1, n_steps), 1)   # (1, n_steps)
    onehot = (ids == steps).astype(jnp.bfloat16)               # (TB, n_steps)
    gamma = jnp.dot(onehot, e_ref[...], preferred_element_type=jnp.float32)

    pre = gamma * z
    # Numerically-stable softplus in f32: max(x, 0) + log1p(exp(-|x|))
    out = jnp.maximum(pre, 0.0) + jnp.log1p(jnp.exp(-jnp.abs(pre)))
    o_ref[...] = out.astype(o_ref.dtype)


def prepare_conditional_linear_params(lin_w, lin_b, embed_w):
    """One-time parameter prep (do NOT call per forward):
    transpose + bf16-cast W, bf16-cast E, optional lane-pad of the out width."""
    num_out, num_in = lin_w.shape
    n_steps = embed_w.shape[0]
    NP = _out_cols(num_out)
    w_t = jnp.zeros((num_in, NP), jnp.bfloat16).at[:, :num_out].set(
        lin_w.T.astype(jnp.bfloat16))
    b_p = jnp.zeros((1, NP), jnp.float32).at[:, :num_out].set(
        lin_b.reshape(1, num_out).astype(jnp.float32))
    e_p = jnp.zeros((n_steps, NP), jnp.bfloat16).at[:, :num_out].set(
        embed_w.astype(jnp.bfloat16))
    return w_t, b_p, e_p


def conditional_linear(x, y, w_t, b_p, e_p, num_out, *, tb=1024,
                       out_dtype=jnp.float32):
    """x: (B, num_in) f32, y: (B,) int, prepared params from
    prepare_conditional_linear_params -> (B, num_out) out_dtype."""
    B, num_in = x.shape
    NP = w_t.shape[1]
    n_steps = e_p.shape[0]
    out_bytes = jnp.dtype(out_dtype).itemsize
    budget = _vmem_budget_bytes()

    # --- N (output-width) tile: whole width if its params are a modest slice
    # of the budget, otherwise a multiple-of-128 divisor of NP.
    def _param_tile_bytes(tn):
        return 2 * (num_in * tn * 2 + tn * 4 + n_steps * tn * 2)

    TN = NP
    if NP % 128 == 0:
        while (TN > 128 and _param_tile_bytes(TN) > budget // 3
               and (TN // 2) % 128 == 0 and NP % (TN // 2) == 0):
            TN //= 2

    # --- batch tile: multiple of 8, shrunk to fit the generation-aware budget.
    # (For best v7x megacore balance choose tb so the batch grid count is even.)
    TB = max(8, min(_round_up(int(tb), 8), _round_up(B, 8)))
    while TB > 8 and _vmem_bytes(TB, TN, num_in, n_steps, out_bytes) > budget:
        TB = max(8, (TB // 2) // 8 * 8)
    B_pad = _round_up(B, TB)

    # Inputs: no dtype cast (bf16 cast happens in-kernel); pad rows only if the
    # batch is ragged w.r.t. the tile.
    if B_pad != B:
        x_in = jnp.pad(x.astype(jnp.float32), ((0, B_pad - B), (0, 0)))
        y_in = jnp.pad(y.astype(jnp.int32).reshape(B, 1),
                       ((0, B_pad - B), (0, 0)))
    else:
        x_in = x.astype(jnp.float32)
        y_in = y.astype(jnp.int32).reshape(B, 1)

    out = pl.pallas_call(
        cond_linear_kernel,
        out_shape=jax.ShapeDtypeStruct((B_pad, NP), out_dtype),
        grid_spec=pltpu.PrefetchScalarGridSpec(
            num_scalar_prefetch=0,
            grid=(B_pad // TB, NP // TN),
            in_specs=[
                pl.BlockSpec((TB, num_in), lambda i, j: (i, 0)),    # x  streamed
                pl.BlockSpec((TB, 1), lambda i, j: (i, 0)),         # y  streamed
                pl.BlockSpec((num_in, TN), lambda i, j: (0, j)),    # W  N-tiled
                pl.BlockSpec((1, TN), lambda i, j: (0, j)),         # b  N-tiled
                pl.BlockSpec((n_steps, TN), lambda i, j: (0, j)),   # E  N-tiled
            ],
            out_specs=pl.BlockSpec((TB, TN), lambda i, j: (i, j)),
        ),
        compiler_params=pltpu.CompilerParams(
            dimension_semantics=("parallel", "parallel"),  # v7x: shard over TCs
            vmem_limit_bytes=int(budget),
        ),
    )(x_in, y_in, w_t, b_p, e_p)

    # Slice only when padding actually happened (avoid extra HBM passes).
    if B_pad != B:
        out = out[:B]
    if NP != num_out:
        out = out[:, :num_out]
    return out


if __name__ == "__main__":
    # Small shapes consistent with the module's forward.
    batch, num_in, num_out, n_steps = 24, 32, 32, 16

    key = jax.random.PRNGKey(0)
    kx, ky, kw, kb, ke = jax.random.split(key, 5)

    x = jax.random.normal(kx, (batch, num_in), dtype=jnp.float32)
    y = jax.random.randint(ky, (batch,), 0, n_steps, dtype=jnp.int32)

    # PyTorch-style init: nn.Linear ~ U(-1/sqrt(num_in), 1/sqrt(num_in)),
    # nn.Embedding.weight.data.uniform_() ~ U(0, 1).
    bound = 1.0 / jnp.sqrt(jnp.float32(num_in))
    lin_w = jax.random.uniform(kw, (num_out, num_in), jnp.float32, -bound, bound)
    lin_b = jax.random.uniform(kb, (num_out,), jnp.float32, -bound, bound)
    embed_w = jax.random.uniform(ke, (n_steps, num_out), jnp.float32, 0.0, 1.0)

    # One-time parameter prep outside the hot path.
    w_t, b_p, e_p = prepare_conditional_linear_params(lin_w, lin_b, embed_w)

    fwd = jax.jit(conditional_linear,
                  static_argnames=("num_out", "tb", "out_dtype"))
    # tb=8 at these toy shapes exercises the batch-tiled grid (3 tiles).
    out = fwd(x, y, w_t, b_p, e_p, num_out=num_out, tb=8)
    out = jax.block_until_ready(out)
    assert out.shape == (batch, num_out)
    assert out.dtype == jnp.float32

    # Reference using the kernel's exact rounding: bf16 MXU operands, bf16
    # embedding table (gamma), f32 accumulate / elementwise.
    z_bf16 = jnp.dot(x.astype(jnp.bfloat16), lin_w.T.astype(jnp.bfloat16),
                     preferred_element_type=jnp.float32) + lin_b
    gamma_bf16 = embed_w[y].astype(jnp.bfloat16).astype(jnp.float32)
    ref_bf16 = jax.nn.softplus(gamma_bf16 * z_bf16)
    assert jnp.allclose(out, ref_bf16, atol=1e-4, rtol=1e-4)

    # Loose sanity check against the pure-f32 PyTorch-equivalent math
    # (difference comes only from the bf16 rounding of the matmul operands
    # and the embedding table).
    ref_f32 = jax.nn.softplus(embed_w[y] * (x @ lin_w.T + lin_b))
    assert jnp.allclose(out, ref_f32, atol=5e-2, rtol=5e-2)

    print("KERNEL_OK")
</pallas_src>

<mosaic_0001>
module attributes {stable_mosaic.version = 11 : i64} {
  func.func @cond_linear_kernel(%arg0: i32, %arg1: i32, %arg2: memref<8x32xf32, #tpu.memory_space<vmem>>, %arg3: memref<8x1xi32, #tpu.memory_space<vmem>>, %arg4: memref<32x32xbf16, #tpu.memory_space<vmem>>, %arg5: memref<1x32xf32, #tpu.memory_space<vmem>>, %arg6: memref<16x32xbf16, #tpu.memory_space<vmem>>, %arg7: memref<8x32xf32, #tpu.memory_space<vmem>>) attributes {dimension_semantics = [#tpu.dimension_semantics<parallel>, #tpu.dimension_semantics<parallel>], iteration_bounds = array<i64: 3, 1>, scalar_prefetch = 0 : i64, scratch_operands = 0 : i64, tpu.core_type = #tpu.core_type<tc>, window_params = [{transform_indices = @transform_0, window_bounds = array<i64: 8, 32>}, {transform_indices = @transform_1, window_bounds = array<i64: 8, 1>}, {transform_indices = @transform_2, window_bounds = array<i64: 32, 32>}, {transform_indices = @transform_3, window_bounds = array<i64: 1, 32>}, {transform_indices = @transform_4, window_bounds = array<i64: 16, 32>}, {transform_indices = @transform_5, window_bounds = array<i64: 8, 32>}]} {
    %c0 = arith.constant 0 : index
    %c0_0 = arith.constant 0 : index
    %0 = vector.load %arg2[%c0, %c0_0] : memref<8x32xf32, #tpu.memory_space<vmem>>, vector<8x32xf32>
    %1 = arith.truncf %0 : vector<8x32xf32> to vector<8x32xbf16>
    %c0_1 = arith.constant 0 : index
    %c0_2 = arith.constant 0 : index
    %2 = vector.load %arg4[%c0_1, %c0_2] : memref<32x32xbf16, #tpu.memory_space<vmem>>, vector<32x32xbf16>
    %cst = arith.constant dense<0.000000e+00> : vector<8x32xf32>
    %3 = tpu.matmul %1, %2, %cst {dimension_numbers = #tpu.dot_dimension_numbers<[1], [0], [0], [1], [0, 0, 1, 1], [], []>} : vector<8x32xbf16>, vector<32x32xbf16>, vector<8x32xf32> -> vector<8x32xf32>
    %c0_3 = arith.constant 0 : index
    %c0_4 = arith.constant 0 : index
    %4 = vector.load %arg5[%c0_3, %c0_4] : memref<1x32xf32, #tpu.memory_space<vmem>>, vector<1x32xf32>
    %5 = vector.broadcast %4 : vector<1x32xf32> to vector<8x32xf32>
    %6 = arith.addf %3, %5 : vector<8x32xf32>
    %c0_5 = arith.constant 0 : index
    %c0_6 = arith.constant 0 : index
    %7 = vector.load %arg3[%c0_5, %c0_6] : memref<8x1xi32, #tpu.memory_space<vmem>>, vector<8x1xi32>
    %8 = tpu.iota {dimensions = array<i32: 1>} : vector<1x16xi32>
    %9 = vector.broadcast %7 : vector<8x1xi32> to vector<8x16xi32>
    %10 = vector.broadcast %8 : vector<1x16xi32> to vector<8x16xi32>
    %11 = arith.cmpi eq, %9, %10 : vector<8x16xi32>
    %12 = arith.extui %11 : vector<8x16xi1> to vector<8x16xi32>
    %13 = arith.sitofp %12 : vector<8x16xi32> to vector<8x16xf32>
    %14 = arith.truncf %13 : vector<8x16xf32> to vector<8x16xbf16>
    %c0_7 = arith.constant 0 : index
    %c0_8 = arith.constant 0 : index
    %15 = vector.load %arg6[%c0_7, %c0_8] : memref<16x32xbf16, #tpu.memory_space<vmem>>, vector<16x32xbf16>
    %cst_9 = arith.constant dense<0.000000e+00> : vector<8x32xf32>
    %16 = tpu.matmul %14, %15, %cst_9 {dimension_numbers = #tpu.dot_dimension_numbers<[1], [0], [0], [1], [0, 0, 1, 1], [], []>} : vector<8x16xbf16>, vector<16x32xbf16>, vector<8x32xf32> -> vector<8x32xf32>
    %17 = arith.mulf %16, %6 : vector<8x32xf32>
    %cst_10 = arith.constant 0.000000e+00 : f32
    %18 = vector.broadcast %cst_10 : f32 to vector<8x32xf32>
    %19 = arith.maximumf %17, %18 : vector<8x32xf32>
    %20 = math.absf %17 : vector<8x32xf32>
    %cst_11 = arith.constant 0.000000e+00 : f32
    %21 = vector.broadcast %cst_11 : f32 to vector<8x32xf32>
    %22 = arith.subf %21, %20 : vector<8x32xf32>
    %23 = math.exp %22 : vector<8x32xf32>
    %24 = math.log1p %23 : vector<8x32xf32>
    %25 = arith.addf %19, %24 : vector<8x32xf32>
    %c0_12 = arith.constant 0 : index
    %c0_13 = arith.constant 0 : index
    %26 = vector.load %arg7[%c0_12, %c0_13] : memref<8x32xf32, #tpu.memory_space<vmem>>, vector<8x32xf32>
    tpu.vector_store %arg7[%c0_12, %c0_13], %25 {strides = array<i32>} : memref<8x32xf32, #tpu.memory_space<vmem>>, vector<8x32xf32>,
    return
  }
  func.func @transform_0(%arg0: i32, %arg1: i32) -> (i32, i32) {
    %c0_i32 = arith.constant 0 : i32
    %c0_i32_0 = arith.constant 0 : i32
    return %arg0, %c0_i32 : i32, i32
  }
  func.func @transform_1(%arg0: i32, %arg1: i32) -> (i32, i32) {
    %c0_i32 = arith.constant 0 : i32
    %c0_i32_0 = arith.constant 0 : i32
    return %arg0, %c0_i32 : i32, i32
  }
  func.func @transform_2(%arg0: i32, %arg1: i32) -> (i32, i32) {
    %c0_i32 = arith.constant 0 : i32
    %c0_i32_0 = arith.constant 0 : i32
    return %c0_i32, %arg1 : i32, i32
  }
  func.func @transform_3(%arg0: i32, %arg1: i32) -> (i32, i32) {
    %c0_i32 = arith.constant 0 : i32
    %c0_i32_0 = arith.constant 0 : i32
    return %c0_i32, %arg1 : i32, i32
  }
  func.func @transform_4(%arg0: i32, %arg1: i32) -> (i32, i32) {
    %c0_i32 = arith.constant 0 : i32
    %c0_i32_0 = arith.constant 0 : i32
    return %c0_i32, %arg1 : i32, i32
  }
  func.func @transform_5(%arg0: i32, %arg1: i32) -> (i32, i32) {
    %c0_i32 = arith.constant 0 : i32
    return %arg0, %arg1 : i32, i32
  }
}

</mosaic_0001>

<llo_original>
// kernel: conditional_linear.1
$region0: #{conditional_linear.1}
  #allocation0 [shape = 'u32[]', space=smem, size = 0x4, offset = 0x4, fixed_abs, tag = 'smem constant byte address 0x4 - core index']
  #allocation1 [shape = 'u32[144,128]{1,0:T(1,128)}', space=vmem, size = 0x12000, scoped, tag = 'internal scratch']
  %s0 = inlined_call_operand.vmem [shape: f32[24,32], index: 0, kind: input, shape index: {}]
  %s1 = inlined_call_operand.vmem [shape: s32[24,1], index: 1, kind: input, shape index: {}]
  %s2 = inlined_call_operand.hbm [shape: bf16[32,32], index: 2, kind: input, shape index: {}]
  %s3 = inlined_call_operand.hbm [shape: f32[1,32], index: 3, kind: input, shape index: {}]
  %s4 = inlined_call_operand.vmem [shape: bf16[16,32], index: 4, kind: input, shape index: {}]
  %s5 = inlined_call_operand.hbm [shape: f32[24,32], index: 5, kind: output, shape index: {}]
  %s6 = sld [smem:[#allocation0]]
  $region61: #{conditional_linear.1} parent=0
    _
  %s8 = ssub.s32 1, %s6
  %s9 = scalar_select 0, %s8, %s6
  $region1: #{conditional_linear.1} parent=0
    #allocation2 [shape = 'u8[8192]{0}', space=vmem, size = 0x2000, scoped, tag = 'input window, operand 2, single buffered']
    #allocation3 [shape = 's32[2]{0}', space=sflag, size = 0x8, scoped, tag = 'scoped memory for conditional_linear.1']
    #allocation4 [shape = 's32[2]{0}', space=sflag, size = 0x8, scoped, tag = 'scoped memory for conditional_linear.1']
    #allocation5 [shape = 'u8[512]{0}', space=vmem, size = 0x400, scoped, tag = 'input window, operand 3, single buffered']
    #allocation6 [shape = 's32[1]{0}', space=sflag, size = 0x4, scoped, tag = 'scoped memory for conditional_linear.1']
    #allocation7 [shape = 'u8[8192]{0}', space=vmem, size = 0x2000, scoped, tag = 'output window, operand 0']
    %10 = vsyncpa [#allocation3], 0
    %11 = vsyncpa [#allocation6], 0
    %12 = vsyncpa [#allocation4], 0
    %s13 = scalar_lea.sflag [#allocation4], 1
    %14 = vsyncpa %s13, 0
    loop: start=0, step=1, limit=5
    $region2: #{conditional_linear.1} parent=1 // loop_pre_header
      _
    $region3: #{conditional_linear.1} parent=1 // loop_header
      %s16 = sphi 0, %s20
      %p17 = scmp.ge.s32.totalorder %s16, 5
      %s23 = sphi 0, %s35
      %s24 = sphi 0, %s31
      %s25 = sphi 0, %s23
      %s26 = sphi 0, %s24
      %s27 = sphi 0, %s25
      %s28 = sphi 0, %s26
      %s38 = sphi 0, %s40
      %s41 = sphi 0, %s38
      %s42 = sphi 0, %s41
      %s58 = sphi 0, %s42
      %s64 = sphi 0, %s66
      %s67 = sphi 0, %s64
      %s68 = sphi 0, %s67
      %s84 = sphi 0, %s68
      %s90 = sphi 0, %s92
      %s93 = sphi 0, %s90
      %s94 = sphi 0, %s93
      %s110 = sphi 0, %s94
      %s116 = sphi 0, %s118
      %s119 = sphi 0, %s116
      %s120 = sphi 0, %s119
      %s136 = sphi 0, %s120
      %s142 = sphi 0, %s144
      %s145 = sphi 0, %s142
      %s146 = sphi 0, %s145
      %s162 = sphi 0, %s146
      %s170 = sphi 0, %s172
      %s173 = sphi 0, %s170
      %s174 = sphi 0, %s173
      %s190 = sphi 0, %s174
    $region4: #{conditional_linear.1} parent=1 // loop_header_branch
      %19 = sbr.rel (%p17) target = $region8
    $region5: #{conditional_linear.1} parent=1 // loop_body
      %s21 = ssub.s32 %s16, 1
      %s22 = ssub.s32 %s16, 2
      %s29 = sadd.s32 1, %s24
      %p30 = scmp.ge.s32.totalorder %s29, 1
      %s31 = scalar_select %p30, 0, %s29
      %s32 = sadd.s32 1, %s23
      %s33 = scalar_select %p30, %s32, %s23
      %p34 = scmp.ge.s32.totalorder %s33, 3
      %s35 = scalar_select %p34, 0, %s33
      %s36 = ssub.s32 %s23, %s35
      %p37 = scmp.eq.s32.totalorder %s36, 0
      %s39 = sadd.s32 %s38, 1
      %s40 = scalar_select %p37, %s38, %s39
      %p43 = pneg %p37
      %p44 = scmp.eq.s32.totalorder %s16, 2
      %p45 = por %p43, %p44
      %p46 = scmp.ne.s32.totalorder %s38, %s41
      %p47 = scmp.eq.s32.totalorder %s16, 0
      %p48 = por %p46, %p47
      %p49 = scmp.ne.s32.totalorder %s38, %s41
      %p50 = scmp.eq.s32.totalorder %s21, 2
      %p51 = por %p49, %p50
      %p52 = scmp.ne.s32.totalorder %s41, %s42
      %p53 = scmp.eq.s32.totalorder %s21, 0
      %p54 = por %p52, %p53
      %p55 = scmp.ne.s32.totalorder %s41, %s42
      %p56 = scmp.eq.s32.totalorder %s22, 2
      %p57 = por %p55, %p56
      %p59 = scmp.ne.s32.totalorder %s42, %s58
      %p60 = scmp.eq.s32.totalorder %s22, 0
      %p61 = por %p59, %p60
      %s62 = ssub.s32 %s23, %s35
      %p63 = scmp.eq.s32.totalorder %s62, 0
      %s65 = sadd.s32 %s64, 1
      %s66 = scalar_select %p63, %s64, %s65
      %p69 = pneg %p63
      %p70 = scmp.eq.s32.totalorder %s16, 2
      %p71 = por %p69, %p70
      %p72 = scmp.ne.s32.totalorder %s64, %s67
      %p73 = scmp.eq.s32.totalorder %s16, 0
      %p74 = por %p72, %p73
      %p75 = scmp.ne.s32.totalorder %s64, %s67
      %p76 = scmp.eq.s32.totalorder %s21, 2
      %p77 = por %p75, %p76
      %p78 = scmp.ne.s32.totalorder %s67, %s68
      %p79 = scmp.eq.s32.totalorder %s21, 0
      %p80 = por %p78, %p79
      %p81 = scmp.ne.s32.totalorder %s67, %s68
      %p82 = scmp.eq.s32.totalorder %s22, 2
      %p83 = por %p81, %p82
      %p85 = scmp.ne.s32.totalorder %s68, %s84
      %p86 = scmp.eq.s32.totalorder %s22, 0
      %p87 = por %p85, %p86
      %s88 = ssub.s32 %s24, %s31
      %p89 = scmp.eq.s32.totalorder %s88, 0
      %s91 = sadd.s32 %s90, 1
      %s92 = scalar_select %p89, %s90, %s91
      %p95 = pneg %p89
      %p96 = scmp.eq.s32.totalorder %s16, 2
      %p97 = por %p95, %p96
      %p98 = scmp.ne.s32.totalorder %s90, %s93
      %p99 = scmp.eq.s32.totalorder %s16, 0
      %p100 = por %p98, %p99
      %p101 = scmp.ne.s32.totalorder %s90, %s93
      %p102 = scmp.eq.s32.totalorder %s21, 2
      %p103 = por %p101, %p102
      %p104 = scmp.ne.s32.totalorder %s93, %s94
      %p105 = scmp.eq.s32.totalorder %s21, 0
      %p106 = por %p104, %p105
      %p107 = scmp.ne.s32.totalorder %s93, %s94
      %p108 = scmp.eq.s32.totalorder %s22, 2
      %p109 = por %p107, %p108
      %p111 = scmp.ne.s32.totalorder %s94, %s110
      %p112 = scmp.eq.s32.totalorder %s22, 0
      %p113 = por %p111, %p112
      %s114 = ssub.s32 %s24, %s31
      %p115 = scmp.eq.s32.totalorder %s114, 0
      %s117 = sadd.s32 %s116, 1
      %s118 = scalar_select %p115, %s116, %s117
      %p121 = pneg %p115
      %p122 = scmp.eq.s32.totalorder %s16, 2
      %p123 = por %p121, %p122
      %p124 = scmp.ne.s32.totalorder %s116, %s119
      %p125 = scmp.eq.s32.totalorder %s16, 0
      %p126 = por %p124, %p125
      %p127 = scmp.ne.s32.totalorder %s116, %s119
      %p128 = scmp.eq.s32.totalorder %s21, 2
      %p129 = por %p127, %p128
      %p130 = scmp.ne.s32.totalorder %s119, %s120
      %p131 = scmp.eq.s32.totalorder %s21, 0
      %p132 = por %p130, %p131
      %p133 = scmp.ne.s32.totalorder %s119, %s120
      %p134 = scmp.eq.s32.totalorder %s22, 2
      %p135 = por %p133, %p134
      %p137 = scmp.ne.s32.totalorder %s120, %s136
      %p138 = scmp.eq.s32.totalorder %s22, 0
      %p139 = por %p137, %p138
      %s140 = ssub.s32 %s24, %s31
      %p141 = scmp.eq.s32.totalorder %s140, 0
      %s143 = sadd.s32 %s142, 1
      %s144 = scalar_select %p141, %s142, %s143
      %p147 = pneg %p141
      %p148 = scmp.eq.s32.totalorder %s16, 2
      %p149 = por %p147, %p148
      %p150 = scmp.ne.s32.totalorder %s142, %s145
      %p151 = scmp.eq.s32.totalorder %s16, 0
      %p152 = por %p150, %p151
      %p153 = scmp.ne.s32.totalorder %s142, %s145
      %p154 = scmp.eq.s32.totalorder %s21, 2
      %p155 = por %p153, %p154
      %p156 = scmp.ne.s32.totalorder %s145, %s146
      %p157 = scmp.eq.s32.totalorder %s21, 0
      %p158 = por %p156, %p157
      %p159 = scmp.ne.s32.totalorder %s145, %s146
      %p160 = scmp.eq.s32.totalorder %s22, 2
      %p161 = por %p159, %p160
      %p163 = scmp.ne.s32.totalorder %s146, %s162
      %p164 = scmp.eq.s32.totalorder %s22, 0
      %p165 = por %p163, %p164
      %s166 = ssub.s32 %s23, %s35
      %s167 = ssub.s32 %s24, %s31
      %s168 = sor.u32 %s166, %s167
      %p169 = scmp.eq.s32.totalorder %s168, 0
      %s171 = sadd.s32 %s170, 1
      %s172 = scalar_select %p169, %s170, %s171
      %p175 = pneg %p169
      %p176 = scmp.eq.s32.totalorder %s16, 2
      %p177 = por %p175, %p176
      %p178 = scmp.ne.s32.totalorder %s170, %s173
      %p179 = scmp.eq.s32.totalorder %s16, 0
      %p180 = por %p178, %p179
      %p181 = scmp.ne.s32.totalorder %s170, %s173
      %p182 = scmp.eq.s32.totalorder %s21, 2
      %p183 = por %p181, %p182
      %p184 = scmp.ne.s32.totalorder %s173, %s174
      %p185 = scmp.eq.s32.totalorder %s21, 0
      %p186 = por %p184, %p185
      %p187 = scmp.ne.s32.totalorder %s173, %s174
      %p188 = scmp.eq.s32.totalorder %s22, 2
      %p189 = por %p187, %p188
      %p191 = scmp.ne.s32.totalorder %s174, %s190
      %p192 = scmp.eq.s32.totalorder %s22, 0
      %p193 = por %p191, %p192
      %p194 = scmp.le.s32.totalorder 1, %s16
      %p195 = scmp.lt.s32.totalorder %s16, 4
      %p196 = pnand %p194, %p195
      %p197 = pneg %p196
      // Predicated region
      $region9: #{conditional_linear.1} parent=5 // pred_check
        _
      $region10: #{conditional_linear.1} parent=5 // pred_check_branch
        %199 = sbr.rel (%p196) target = $region12
      $region11: #{conditional_linear.1} parent=5 // pred_region
        %s200 = ssub.s32 %s16, 1
        // Predicated region
        $region13: #{conditional_linear.1} parent=11 // pred_check
          %p201 = pneg %p106
        $region14: #{conditional_linear.1} parent=11 // pred_check_branch
          %203 = sbr.rel (%p201) target = $region16
        $region15: #{conditional_linear.1} parent=11 // pred_region
          %s205 = ssub.s32 256, 256
          %206 = vsyncadd [#allocation3], %s205
          %s207 = smul.addr %s26, 64
          %s208 = scalar_lea.hbm %s2, %s207
          %s209 = sshll.u32 [#allocation2], 4
          %s210 = int_to_ptr.vmem [resolvable:$true] %s209
          %215 = dma.hbm_to_vmem [thread:$0]  %s208, 256, %s210, [#allocation3], 64, 64, 4
        $region16: #{conditional_linear.1} parent=11 // pred_fallthru
          _
        // Predicated region
        $region17: #{conditional_linear.1} parent=11 // pred_check
          %p216 = pneg %p132
        $region18: #{conditional_linear.1} parent=11 // pred_check_branch
          %218 = sbr.rel (%p216) target = $region20
        $region19: #{conditional_linear.1} parent=11 // pred_region
          %s220 = ssub.s32 16, 16
          %221 = vsyncadd [#allocation6], %s220
          %s222 = smul.addr %s26, 16
          %s223 = scalar_lea.hbm %s3, %s222
          %s225 = sshll.u32 [#allocation5], 4
          %s226 = int_to_ptr.vmem [resolvable:$true] %s225
          %228 = dma.hbm_to_vmem [thread:$0]  %s223, 16, %s226, [#allocation6]
        $region20: #{conditional_linear.1} parent=11 // pred_fallthru
          _
        // Predicated region
        $region21: #{conditional_linear.1} parent=11 // pred_check
          %p229 = pneg %p158
        $region22: #{conditional_linear.1} parent=11 // pred_check_branch
          %231 = sbr.rel (%p229) target = $region24
        $region23: #{conditional_linear.1} parent=11 // pred_region
          %p232 = scmp.lt.s32.totalorder %s26, 0
          %s233 = scalar_select %p232, %s26, 0
          %s234 = smul.addr %s233, 4
          %s235 = scalar_lea.vmem %s4, %s234
        $region24: #{conditional_linear.1} parent=11 // pred_fallthru
          _
      $region12: #{conditional_linear.1} parent=5 // pred_fallthru
        _
      %p236 = scmp.lt.s32.totalorder %s16, 3
      // Predicated region
      $region25: #{conditional_linear.1} parent=5 // pred_check
        %p237 = pneg %p236
      $region26: #{conditional_linear.1} parent=5 // pred_check_branch
        %239 = sbr.rel (%p237) target = $region28
      $region27: #{conditional_linear.1} parent=5 // pred_region
        // Predicated region
        $region29: #{conditional_linear.1} parent=27 // pred_check
          %p240 = pneg %p48
        $region30: #{conditional_linear.1} parent=27 // pred_check_branch
          %242 = sbr.rel (%p240) target = $region32
        $region31: #{conditional_linear.1} parent=27 // pred_region
          %p243 = scmp.lt.s32.totalorder %s23, 2
          %s244 = scalar_select %p243, %s23, 2
          %s245 = smul.addr %s244, 8
          %s246 = scalar_lea.vmem %s0, %s245
        $region32: #{conditional_linear.1} parent=27 // pred_fallthru
          _
        // Predicated region
        $region33: #{conditional_linear.1} parent=27 // pred_check
          %p247 = pneg %p74
        $region34: #{conditional_linear.1} parent=27 // pred_check_branch
          %249 = sbr.rel (%p247) target = $region36
        $region35: #{conditional_linear.1} parent=27 // pred_region
          %p250 = scmp.lt.s32.totalorder %s23, 2
          %s251 = scalar_select %p250, %s23, 2
          %s252 = smul.addr %s251, 8
          %s253 = scalar_lea.vmem %s1, %s252
        $region36: #{conditional_linear.1} parent=27 // pred_fallthru
          _
      $region28: #{conditional_linear.1} parent=5 // pred_fallthru
        _
      %p254 = scmp.le.s32.totalorder 1, %s16
      %p255 = scmp.lt.s32.totalorder %s16, 4
      %p256 = pnand %p254, %p255
      %p257 = pneg %p256
      // Predicated region
      $region37: #{conditional_linear.1} parent=5 // pred_check
        _
      $region38: #{conditional_linear.1} parent=5 // pred_check_branch
        %259 = sbr.rel (%p256) target = $region40
      $region39: #{conditional_linear.1} parent=5 // pred_region
        %s260 = ssub.s32 %s16, 1
        // Predicated region
        $region41: #{conditional_linear.1} parent=39 // pred_check
          %p261 = pneg %p106
        $region42: #{conditional_linear.1} parent=39 // pred_check_branch
          %263 = sbr.rel (%p261) target = $region44
        $region43: #{conditional_linear.1} parent=39 // pred_region
          %264 = dma.done [#allocation3], 256
        $region44: #{conditional_linear.1} parent=39 // pred_fallthru
          _
        // Predicated region
        $region45: #{conditional_linear.1} parent=39 // pred_check
          %p265 = pneg %p132
        $region46: #{conditional_linear.1} parent=39 // pred_check_branch
          %267 = sbr.rel (%p265) target = $region48
        $region47: #{conditional_linear.1} parent=39 // pred_region
          %268 = dma.done [#allocation6], 16
        $region48: #{conditional_linear.1} parent=39 // pred_fallthru
          _
        %p269 = scmp.lt.s32.totalorder %s25, 2
        %s270 = scalar_select %p269, %s25, 2
        %s271 = smul.addr %s270, 8
        %s272 = scalar_lea.vmem %s0, %s271
        %p273 = pneg %p54
        %p274 = pneg %p51
        %p275 = scmp.lt.s32.totalorder %s25, 2
        %s276 = scalar_select %p275, %s25, 2
        %s277 = smul.addr %s276, 8
        %s278 = scalar_lea.vmem %s1, %s277
        %p279 = pneg %p80
        %p280 = pneg %p77
        %p281 = pneg %p106
        %p282 = pneg %p103
        %p283 = pneg %p132
        %p284 = pneg %p129
        %p285 = scmp.lt.s32.totalorder %s26, 0
        %s286 = scalar_select %p285, %s26, 0
        %s287 = smul.addr %s286, 4
        %s288 = scalar_lea.vmem %s4, %s287
        %p289 = pneg %p158
        %p290 = pneg %p155
        %p291 = pneg %p186
        %p292 = pneg %p183
        %s293 = sand.u32 %s173, 1
        %s294 = scalar_lea.sflag [#allocation4], %s293
        %s295 = sand.u32 %s173, 1
        %s296 = smul.addr %s295, 8
        %s297 = scalar_lea.vmem [#allocation7], %s296
        %p298 = scmp.lt.s32.totalorder %s25, 2
        %s299 = scalar_select %p298, %s25, 2
        %s300 = smul.addr %s299, 8
        %s301 = scalar_lea.vmem %s0, %s300
        %p302 = scmp.lt.s32.totalorder %s25, 2
        %s303 = scalar_select %p302, %s25, 2
        %s304 = smul.addr %s303, 8
        %s305 = scalar_lea.vmem %s1, %s304
        %p306 = scmp.lt.s32.totalorder %s26, 0
        %s307 = scalar_select %p306, %s26, 0
        %s308 = smul.addr %s307, 4
        %s309 = scalar_lea.vmem %s4, %s308
        %v311 = vld [vmem:[%s301] sm:$0xff]
        %v312 = vpack.c.bf16 %v311, %v311
        %v313 = vld [vmem:[#allocation2] sm:$0xf]
        %v314 = vld [vmem:[#allocation2 + $0x4] sm:$0xf]
        %v315 = vld [vmem:[#allocation2 + $0x8] sm:$0xf]
        %v316 = vld [vmem:[#allocation2 + $0xc] sm:$0xf]
        %v317 = vld [vmem:[#allocation5] sm:$0x1]
        %v319 = vlaneseq
        %v320 = vshrl.u32 %v319, 7
        %v321 = vsub.s32 0, %v320
        %v322 = vrot.slane %v317, %v321
        %v328 = vunpack.c.l.b16 %v313
        %v329 = vunpack.c.l.b16 %v314
        %v330 = vunpack.c.l.b16 %v315
        %v331 = vunpack.c.l.b16 %v316
        %v332 = vpack.c.b16 %v329, %v328
        %v333 = vpack.c.b16 %v331, %v330
        %vm336 = vcmask 261120
        %v338 = vsel %vm336, %v312, 0
        %340 = vmatprep.subr.bf16.mxu0 0
        %341 = vmatpush1.bf16.msra.mxu0 0
        %342 = vmatprep.subr.bf16.mxu0 0
        %343 = vmatpush1.bf16.msra.mxu0 0
        %344 = vmatprep.subr.bf16.mxu0 0
        %345 = vmatpush1.bf16.msra.mxu0 0
        %346 = vmatprep.subr.bf16.mxu0 0
        %347 = vmatpush1.bf16.msra.mxu0 0
        %348 = vmatprep.subr.bf16.mxu0 0
        %349 = vmatpush1.bf16.msra.mxu0 0
        %350 = vmatprep.subr.bf16.mxu0 0
        %351 = vmatpush1.bf16.msra.mxu0 0
        %352 = vmatprep.subr.bf16.mxu0 0
        %353 = vmatpush1.bf16.msra.mxu0 %v333
        %354 = vmatprep.subr.bf16.mxu0 0
        %355 = vmatpush1.bf16.msra.mxu0 %v332
        %356 = vmatprep.subr.bf16.mxu0 0
        %357 = vmatpush2.bf16.msra.mxu0 0
        %358 = vmatprep.subr.bf16.mxu0 0
        %359 = vmatpush2.bf16.msra.mxu0 0
        %360 = vmatprep.subr.bf16.mxu0 0
        %361 = vmatpush2.bf16.msra.mxu0 0
        %362 = vmatprep.subr.bf16.mxu0 0
        %363 = vmatpush2.bf16.msra.mxu0 0
        %364 = vmatprep.subr.bf16.mxu0 0
        %365 = vmatpush2.bf16.msra.mxu0 0
        %366 = vmatprep.subr.bf16.mxu0 0
        %367 = vmatpush2.bf16.msra.mxu0 0
        %368 = vmatprep.subr.bf16.mxu0 0
        %369 = vmatpush2.bf16.msra.mxu0 0
        %370 = vmatprep.subr.bf16.mxu0 0
        %371 = vmatpush2.bf16.msra.mxu0 0
        %372 = vmatprep.mubr.bf16.mxu0 0
        %373 = vmatmul.mubr.bf16.gmra.mxu0 %v338
        %v374 = vpop.f32.mrf.mxu0
        %v375 = vadd.f32 %v322, %v374
        %v376 = vpop.f32.mrf.mxu0
        %v377 = vpop.f32.mrf.mxu0
        %v378 = vpop.f32.mrf.mxu0
        %379 = vdwg.mxu0
        %v380 = vld [vmem:[%s305] sm:$0xff]
        %v381 = vlaneseq
        %v382 = vand.u32 %v381, 127
        %383 = vset.pattern.permute.xlu0 0
        %384 = vperm.xlu0 %383, %v380
        %v385 = vpop.permute.xlu0 %384
        %vm386 = vcmp.eq.s32.totalorder %v385, %v382
        %v387 = vsel %vm386, 1, 0
        %v388 = vcvt.s32.f32 %v387
        %v389 = vpack.c.bf16 %v388, %v388
        %v390 = vld [vmem:[%s309] sm:$0xf]
        %v391 = vld [vmem:[%s309 + $0x4] sm:$0xf]
        %v394 = vunpack.c.l.b16 %v390
        %v395 = vunpack.c.l.b16 %v391
        %v396 = vpack.c.b16 %v395, %v394
        %vm398 = vcmask 130048
        %v400 = vsel %vm398, %v389, 0
        %402 = vmatprep.subr.bf16.mxu0 0
        %403 = vmatpush1.bf16.msra.mxu0 0
        %404 = vmatprep.subr.bf16.mxu0 0
        %405 = vmatpush1.bf16.msra.mxu0 0
        %406 = vmatprep.subr.bf16.mxu0 0
        %407 = vmatpush1.bf16.msra.mxu0 0
        %408 = vmatprep.subr.bf16.mxu0 0
        %409 = vmatpush1.bf16.msra.mxu0 0
        %410 = vmatprep.subr.bf16.mxu0 0
        %411 = vmatpush1.bf16.msra.mxu0 0
        %412 = vmatprep.subr.bf16.mxu0 0
        %413 = vmatpush1.bf16.msra.mxu0 0
        %414 = vmatprep.subr.bf16.mxu0 0
        %415 = vmatpush1.bf16.msra.mxu0 0
        %416 = vmatprep.subr.bf16.mxu0 0
        %417 = vmatpush1.bf16.msra.mxu0 %v396
        %418 = vmatprep.subr.bf16.mxu0 0
        %419 = vmatpush2.bf16.msra.mxu0 0
        %420 = vmatprep.subr.bf16.mxu0 0
        %421 = vmatpush2.bf16.msra.mxu0 0
        %422 = vmatprep.subr.bf16.mxu0 0
        %423 = vmatpush2.bf16.msra.mxu0 0
        %424 = vmatprep.subr.bf16.mxu0 0
        %425 = vmatpush2.bf16.msra.mxu0 0
        %426 = vmatprep.subr.bf16.mxu0 0
        %427 = vmatpush2.bf16.msra.mxu0 0
        %428 = vmatprep.subr.bf16.mxu0 0
        %429 = vmatpush2.bf16.msra.mxu0 0
        %430 = vmatprep.subr.bf16.mxu0 0
        %431 = vmatpush2.bf16.msra.mxu0 0
        %432 = vmatprep.subr.bf16.mxu0 0
        %433 = vmatpush2.bf16.msra.mxu0 0
        %434 = vmatprep.mubr.bf16.mxu0 0
        %435 = vmatmul.mubr.bf16.gmra.mxu0 %v400
        %v436 = vpop.f32.mrf.mxu0
        %v437 = vadd.f32 0.0, %v436
        %v438 = vpop.f32.mrf.mxu0
        %v439 = vpop.f32.mrf.mxu0
        %v440 = vpop.f32.mrf.mxu0
        %441 = vdwg.mxu0
        %v442 = vmul.f32 %v437, %v375
        %v443 = vmax.f32 %v442, 0.0
        %v444 = vand.u32 2147483647, %v442
        %v445 = vsub.f32 0.0, %v444
        %v446 = vmul.f32 %v445, 1.442695
        %v447 = vpow.pop %v446
        %v448 = vadd.f32 %v447, 1.0
        %v449 = vlog2.pop %v448
        %v450 = vmul.f32 %v449, 0.6931472
        %v451 = vmul.f32 -0.5, %v447
        %v452 = vadd.f32 %v451, 1.0
        %v453 = vmul.f32 %v452, %v447
        %v454 = vand.u32 2147483647, %v447
        %vm455 = vcmp.lt.f32.partialorder %v454, 0.0004427343
        %v456 = vsel %vm455, %v453, %v450
        %v457 = vadd.f32 %v443, %v456
        %458 = vst.msk [vmem:[%s297] sm:$0xff] %vm336, %v457
        %s459 = sand.u32 %s173, 1
        %s460 = scalar_lea.sflag [#allocation4], %s459
        %s461 = sand.u32 %s173, 1
        %s462 = smul.addr %s461, 8
        %s463 = scalar_lea.vmem [#allocation7], %s462
        // Predicated region
        $region49: #{conditional_linear.1} parent=39 // pred_check
          %p464 = pneg %p183
        $region50: #{conditional_linear.1} parent=39 // pred_check_branch
          %466 = sbr.rel (%p464) target = $region52
        $region51: #{conditional_linear.1} parent=39 // pred_region
          %s468 = ssub.s32 128, 128
          %469 = vsyncadd %s460, %s468
          %s470 = sadd.s32 %s26, %s25
          %s471 = smul.addr %s470, 128
          %s472 = scalar_lea.hbm %s5, %s471
          %s474 = sshll.u32 %s463, 4
          %s475 = int_to_ptr.vmem [resolvable:$true] %s474
          %477 = dma.vmem_to_hbm [thread:$0]  %s475, 128, %s472, %s460
        $region52: #{conditional_linear.1} parent=39 // pred_fallthru
          _
      $region40: #{conditional_linear.1} parent=5 // pred_fallthru
        _
      %p478 = scmp.le.s32.totalorder 2, %s16
      // Predicated region
      $region53: #{conditional_linear.1} parent=5 // pred_check
        %p479 = pneg %p478
      $region54: #{conditional_linear.1} parent=5 // pred_check_branch
        %481 = sbr.rel (%p479) target = $region56
      $region55: #{conditional_linear.1} parent=5 // pred_region
        %s482 = ssub.s32 %s16, 2
        // Predicated region
        $region57: #{conditional_linear.1} parent=55 // pred_check
          %p483 = pneg %p189
        $region58: #{conditional_linear.1} parent=55 // pred_check_branch
          %485 = sbr.rel (%p483) target = $region60
        $region59: #{conditional_linear.1} parent=55 // pred_region
          %s486 = sand.u32 %s174, 1
          %s487 = scalar_lea.sflag [#allocation4], %s486
          %s488 = sand.u32 %s174, 1
          %s489 = smul.addr %s488, 8
          %s490 = scalar_lea.vmem [#allocation7], %s489
          %491 = dma.done %s487, 128
        $region60: #{conditional_linear.1} parent=55 // pred_fallthru
          _
      $region56: #{conditional_linear.1} parent=5 // pred_fallthru
        _
    $region6: #{conditional_linear.1} parent=1 // loop_footer
      %s20 = sadd.s32 1, %s16
    $region7: #{conditional_linear.1} parent=1 // loop_footer_branch
      %15 = sbr.rel target = $region3
    $region8: #{conditional_linear.1} parent=1 // loop_exit
      _
    %492 = vsyncpa [#allocation3], 1
    %s493 = scalar_lea.sflag [#allocation3], 1
    %494 = vsyncpa %s493, 1
    %495 = vsyncpa [#allocation6], 1
    %496 = vsyncpa [#allocation4], 1
    %s497 = scalar_lea.sflag [#allocation4], 1
    %498 = vsyncpa %s497, 1

</llo_original>
